<compile_context>
chip_gen: v6e
topology: v6e:2x2x1
jax: 0.10.0
libtpu: 0.0.40
codegen_flags: <defaults>
</compile_context>

<pallas_src>
import functools
import math

import jax
import jax.numpy as jnp
from jax.experimental import pallas as pl
from jax.experimental.pallas import tpu as pltpu


def _proto_logits_kernel(proto_ref, query_ref, p2_ref, out_ref,
                         qs_acc, q2_acc):
    """Grid = (query tiles, D tiles); axis 1 (D) is the reduction axis."""
    k = pl.program_id(1)
    contract_last = (((1,), (1,)), ((), ()))  # a @ b.T without materializing b.T

    @pl.when(k == 0)
    def _init():
        qs_acc[...] = jnp.zeros_like(qs_acc)
        q2_acc[...] = jnp.zeros_like(q2_acc)

    p = proto_ref[...]    # (n_p_pad, td)  native dtype straight into the MXU
    q = query_ref[...]    # (tq,      td)

    # Per-tile work: one MXU push + one VPU/XLU square-sum, f32-accumulated.
    qs_acc[...] += jax.lax.dot_general(q, p, contract_last,
                                       preferred_element_type=jnp.float32)
    q32 = q.astype(jnp.float32)
    q2_acc[...] += jnp.sum(q32 * q32, axis=-1, keepdims=True)

    @pl.when(k == pl.num_programs(1) - 1)
    def _finalize():
        # -||q - p||^2 = 2 q.p - ||q||^2 - ||p||^2
        # (padded prototype columns hold -||q||^2; sliced off in the wrapper)
        out_ref[...] = 2.0 * qs_acc[...] - q2_acc[...] - p2_ref[...]


def _vmem_budget():
    """(vmem_limit_bytes, tile-selection budget) tuned per TPU generation."""
    try:
        cap = int(getattr(pltpu.get_tpu_info(), "vmem_capacity_bytes",
                          64 * 1024 * 1024))
    except Exception:  # not on TPU / old jax: assume the smallest (v7x) VMEM
        cap = 64 * 1024 * 1024
    limit = int(min(cap * 0.78, 100 * 1024 * 1024))   # ~100 MiB v5e/v6e, ~48 MiB v7x
    return limit, limit - 4 * 1024 * 1024


def _choose_tq(n_q_pad):
    cands = [c for c in (512, 256, 128) if n_q_pad % c == 0]
    if not cands:
        return n_q_pad                       # full extent (already 8-aligned)
    multi = [c for c in cands if n_q_pad // c >= 2]  # keep both v7x cores busy
    return (multi or cands)[0]


def _choose_td(d_pad, tq, n_p_pad, itemsize, budget):
    base = d_pad // 512
    cands = sorted({512 * f for f in range(1, base + 1) if base % f == 0},
                   reverse=True)
    per_step_cap = 16 * 1024 * 1024          # 8-16 MiB of input per grid step

    def step_bytes(td):
        return (tq + n_p_pad) * td * itemsize

    def fits(td):
        fp = (2 * step_bytes(td)             # double-buffered proto + query tiles
              + 2 * n_p_pad * 4              # p2 input (fetched once, tiny)
              + 2 * tq * n_p_pad * 4         # double-buffered output tile
              + (tq * n_p_pad + tq) * 4)     # scratch accumulators
        return fp <= budget

    for td in cands:                          # big tile, pipelined (>=2 steps)
        if d_pad // td >= 2 and step_bytes(td) <= per_step_cap and fits(td):
            return td
    for td in cands:                          # otherwise largest that fits
        if fits(td):
            return td
    return cands[-1]                          # 512; minimal tile


def _pad2d(x, rows, cols):
    r, c = x.shape
    if r == rows and c == cols:
        return x
    return jnp.pad(x, ((0, rows - r), (0, cols - c)))


def few_shot_forward(support_set: jax.Array, query_set: jax.Array) -> jax.Array:
    """support_set: [n_way, k_shot, C, H, W]; query_set: [n_query, C, H, W]."""
    n_way, k_shot = int(support_set.shape[0]), int(support_set.shape[1])
    n_query = int(query_set.shape[0])
    d = int(math.prod(query_set.shape[1:]))
    dtype = query_set.dtype
    itemsize = jnp.dtype(dtype).itemsize

    # Prototypes (mean over shots) and their squared norms: tiny wrapper-side
    # jnp ops.  This removes the per-query-tile support Gram from the kernel.
    protos = support_set.reshape(n_way, k_shot, d).astype(jnp.float32).mean(axis=1)
    protos = protos.astype(dtype)
    query = query_set.reshape(n_query, d)

    # Padded shapes: D to a multiple of 512 (zero padding is exact for q.p,
    # ||q||^2, ||p||^2), classes to a multiple of 8, queries to 8 (or 128 when
    # large so the 128/256/512 query tiles divide evenly).
    d_pad = max(512, pl.cdiv(d, 512) * 512)
    n_p_pad = max(8, pl.cdiv(n_way, 8) * 8)
    if n_query > 128:
        n_q_pad = pl.cdiv(n_query, 128) * 128
    else:
        n_q_pad = max(8, pl.cdiv(n_query, 8) * 8)

    protos_p = _pad2d(protos, n_p_pad, d_pad)
    query_p = _pad2d(query, n_q_pad, d_pad)
    p2 = jnp.sum(protos_p.astype(jnp.float32) ** 2, axis=-1)[None, :]  # (1, n_p_pad)

    vmem_limit, budget = _vmem_budget()
    tq = _choose_tq(n_q_pad)
    td = _choose_td(d_pad, tq, n_p_pad, itemsize, budget)
    grid = (n_q_pad // tq, d_pad // td)

    out = pl.pallas_call(
        _proto_logits_kernel,
        out_shape=jax.ShapeDtypeStruct((n_q_pad, n_p_pad), jnp.float32),
        grid_spec=pltpu.PrefetchScalarGridSpec(
            num_scalar_prefetch=0,
            grid=grid,
            in_specs=[
                pl.BlockSpec((n_p_pad, td), lambda i, k: (0, k)),   # prototypes
                pl.BlockSpec((tq, td), lambda i, k: (i, k)),        # queries
                pl.BlockSpec((1, n_p_pad), lambda i, k: (0, 0)),    # ||p||^2
            ],
            out_specs=pl.BlockSpec((tq, n_p_pad), lambda i, k: (i, 0)),
            scratch_shapes=[
                pltpu.VMEM((tq, n_p_pad), jnp.float32),  # q . p accumulator
                pltpu.VMEM((tq, 1), jnp.float32),        # ||q||^2 accumulator
            ],
        ),
        compiler_params=pltpu.CompilerParams(
            dimension_semantics=("parallel", "arbitrary"),
            vmem_limit_bytes=vmem_limit,
        ),
    )(protos_p, query_p, p2)

    return out[:n_query, :n_way]


def _reference(support_set, query_set):
    n_way, k_shot = support_set.shape[0], support_set.shape[1]
    n_query = query_set.shape[0]
    d = int(math.prod(query_set.shape[1:]))
    protos = support_set.reshape(n_way, k_shot, d).astype(jnp.float32).mean(axis=1)
    q = query_set.reshape(n_query, d).astype(jnp.float32)
    diff = q[:, None, :] - protos[None, :, :]
    return -jnp.sum(diff * diff, axis=-1)


if __name__ == "__main__":
    # 4-way, 2-shot episode of 4x16x16 images, 8 queries (D = 1024 -> 2 D-tiles).
    n_way, k_shot, C, H, W, n_query = 4, 2, 4, 16, 16, 8
    key = jax.random.PRNGKey(0)
    k1, k2 = jax.random.split(key)
    support_set = jax.random.normal(k1, (n_way, k_shot, C, H, W), dtype=jnp.float32)
    query_set = jax.random.normal(k2, (n_query, C, H, W), dtype=jnp.float32)

    logits = few_shot_forward(support_set, query_set)
    jax.block_until_ready(logits)

    ref = _reference(support_set, query_set)
    assert logits.shape == (n_query, n_way)
    assert jnp.allclose(logits, ref, rtol=1e-3, atol=1e-1), "mismatch vs reference"
    print("KERNEL_OK")
</pallas_src>

<mosaic_0001>
module attributes {stable_mosaic.version = 11 : i64} {
  func.func @_proto_logits_kernel(%arg0: i32, %arg1: i32, %arg2: memref<8x512xf32, #tpu.memory_space<vmem>>, %arg3: memref<8x512xf32, #tpu.memory_space<vmem>>, %arg4: memref<1x8xf32, #tpu.memory_space<vmem>>, %arg5: memref<8x8xf32, #tpu.memory_space<vmem>>, %arg6: memref<8x8xf32, #tpu.memory_space<vmem>>, %arg7: memref<8x1xf32, #tpu.memory_space<vmem>>) attributes {dimension_semantics = [#tpu.dimension_semantics<parallel>, #tpu.dimension_semantics<arbitrary>], iteration_bounds = array<i64: 1, 2>, scalar_prefetch = 0 : i64, scratch_operands = 2 : i64, tpu.core_type = #tpu.core_type<tc>, window_params = [{transform_indices = @transform_0, window_bounds = array<i64: 8, 512>}, {transform_indices = @transform_1, window_bounds = array<i64: 8, 512>}, {pipeline_mode = #tpu.pipeline_mode<synchronous>, transform_indices = @transform_2, window_bounds = array<i64: 1, 8>}, {transform_indices = @transform_3, window_bounds = array<i64: 8, 8>}]} {
    %c0_i32 = arith.constant 0 : i32
    %0 = arith.cmpi eq, %arg1, %c0_i32 : i32
    %1 = arith.extui %0 : i1 to i32
    %c0_i32_0 = arith.constant 0 : i32
    %2 = arith.cmpi ne, %1, %c0_i32_0 : i32
    scf.if %2 {
      %cst_14 = arith.constant 0.000000e+00 : f32
      %18 = vector.broadcast %cst_14 : f32 to vector<8x8xf32>
      %c0_15 = arith.constant 0 : index
      %c0_16 = arith.constant 0 : index
      %19 = vector.load %arg6[%c0_15, %c0_16] : memref<8x8xf32, #tpu.memory_space<vmem>>, vector<8x8xf32>
      tpu.vector_store %arg6[%c0_15, %c0_16], %18 {strides = array<i32>} : memref<8x8xf32, #tpu.memory_space<vmem>>, vector<8x8xf32>,
      %cst_17 = arith.constant 0.000000e+00 : f32
      %20 = vector.broadcast %cst_17 : f32 to vector<8x1xf32>
      %c0_18 = arith.constant 0 : index
      %c0_19 = arith.constant 0 : index
      %21 = vector.load %arg7[%c0_18, %c0_19] : memref<8x1xf32, #tpu.memory_space<vmem>>, vector<8x1xf32>
      tpu.vector_store %arg7[%c0_18, %c0_19], %20 {strides = array<i32>} : memref<8x1xf32, #tpu.memory_space<vmem>>, vector<8x1xf32>,
    } else {
    }
    %c0 = arith.constant 0 : index
    %c0_1 = arith.constant 0 : index
    %3 = vector.load %arg2[%c0, %c0_1] : memref<8x512xf32, #tpu.memory_space<vmem>>, vector<8x512xf32>
    %c0_2 = arith.constant 0 : index
    %c0_3 = arith.constant 0 : index
    %4 = vector.load %arg3[%c0_2, %c0_3] : memref<8x512xf32, #tpu.memory_space<vmem>>, vector<8x512xf32>
    %c0_4 = arith.constant 0 : index
    %c0_5 = arith.constant 0 : index
    %5 = vector.load %arg6[%c0_4, %c0_5] : memref<8x8xf32, #tpu.memory_space<vmem>>, vector<8x8xf32>
    %cst = arith.constant dense<0.000000e+00> : vector<8x8xf32>
    %6 = tpu.matmul %4, %3, %cst {dimension_numbers = #tpu.dot_dimension_numbers<[1], [1], [0], [0], [0, 0, 1, 0], [], []>} : vector<8x512xf32>, vector<8x512xf32>, vector<8x8xf32> -> vector<8x8xf32>
    %7 = arith.addf %5, %6 : vector<8x8xf32>
    %c0_6 = arith.constant 0 : index
    %c0_7 = arith.constant 0 : index
    %8 = vector.load %arg6[%c0_6, %c0_7] : memref<8x8xf32, #tpu.memory_space<vmem>>, vector<8x8xf32>
    tpu.vector_store %arg6[%c0_6, %c0_7], %7 {strides = array<i32>} : memref<8x8xf32, #tpu.memory_space<vmem>>, vector<8x8xf32>,
    %c0_8 = arith.constant 0 : index
    %c0_9 = arith.constant 0 : index
    %9 = vector.load %arg7[%c0_8, %c0_9] : memref<8x1xf32, #tpu.memory_space<vmem>>, vector<8x1xf32>
    %10 = arith.mulf %4, %4 : vector<8x512xf32>
    %cst_10 = arith.constant dense<0.000000e+00> : vector<8xf32>
    %11 = vector.multi_reduction <add>, %10, %cst_10 [1] : vector<8x512xf32> to vector<8xf32>
    %12 = vector.shape_cast %11 : vector<8xf32> to vector<8x1xf32>
    %13 = arith.addf %9, %12 : vector<8x1xf32>
    %c0_11 = arith.constant 0 : index
    %c0_12 = arith.constant 0 : index
    %14 = vector.load %arg7[%c0_11, %c0_12] : memref<8x1xf32, #tpu.memory_space<vmem>>, vector<8x1xf32>
    tpu.vector_store %arg7[%c0_11, %c0_12], %13 {strides = array<i32>} : memref<8x1xf32, #tpu.memory_space<vmem>>, vector<8x1xf32>,
    %c1_i32 = arith.constant 1 : i32
    %15 = arith.cmpi eq, %arg1, %c1_i32 : i32
    %16 = arith.extui %15 : i1 to i32
    %c0_i32_13 = arith.constant 0 : i32
    %17 = arith.cmpi ne, %16, %c0_i32_13 : i32
    scf.if %17 {
      %c0_14 = arith.constant 0 : index
      %c0_15 = arith.constant 0 : index
      %18 = vector.load %arg6[%c0_14, %c0_15] : memref<8x8xf32, #tpu.memory_space<vmem>>, vector<8x8xf32>
      %cst_16 = arith.constant 2.000000e+00 : f32
      %19 = vector.broadcast %cst_16 : f32 to vector<8x8xf32>
      %20 = arith.mulf %19, %18 : vector<8x8xf32>
      %c0_17 = arith.constant 0 : index
      %c0_18 = arith.constant 0 : index
      %21 = vector.load %arg7[%c0_17, %c0_18] : memref<8x1xf32, #tpu.memory_space<vmem>>, vector<8x1xf32>
      %22 = vector.broadcast %21 : vector<8x1xf32> to vector<8x8xf32>
      %23 = arith.subf %20, %22 : vector<8x8xf32>
      %c0_19 = arith.constant 0 : index
      %c0_20 = arith.constant 0 : index
      %24 = vector.load %arg4[%c0_19, %c0_20] : memref<1x8xf32, #tpu.memory_space<vmem>>, vector<1x8xf32>
      %25 = vector.broadcast %24 : vector<1x8xf32> to vector<8x8xf32>
      %26 = arith.subf %23, %25 : vector<8x8xf32>
      %c0_21 = arith.constant 0 : index
      %c0_22 = arith.constant 0 : index
      %27 = vector.load %arg5[%c0_21, %c0_22] : memref<8x8xf32, #tpu.memory_space<vmem>>, vector<8x8xf32>
      tpu.vector_store %arg5[%c0_21, %c0_22], %26 {strides = array<i32>} : memref<8x8xf32, #tpu.memory_space<vmem>>, vector<8x8xf32>,
    } else {
    }
    return
  }
  func.func @transform_0(%arg0: i32, %arg1: i32) -> (i32, i32) {
    %c0_i32 = arith.constant 0 : i32
    %c0_i32_0 = arith.constant 0 : i32
    return %c0_i32, %arg1 : i32, i32
  }
  func.func @transform_1(%arg0: i32, %arg1: i32) -> (i32, i32) {
    %c0_i32 = arith.constant 0 : i32
    return %arg0, %arg1 : i32, i32
  }
  func.func @transform_2(%arg0: i32, %arg1: i32) -> (i32, i32) {
    %c0_i32 = arith.constant 0 : i32
    %c0_i32_0 = arith.constant 0 : i32
    %c0_i32_1 = arith.constant 0 : i32
    return %c0_i32, %c0_i32_0 : i32, i32
  }
  func.func @transform_3(%arg0: i32, %arg1: i32) -> (i32, i32) {
    %c0_i32 = arith.constant 0 : i32
    %c0_i32_0 = arith.constant 0 : i32
    return %arg0, %c0_i32 : i32, i32
  }
}

</mosaic_0001>

<llo_original>
// kernel: tpu_custom_call.1
$region0: #{tpu_custom_call.1}
  #allocation0 [shape = 'u32[]', space=smem, size = 0x4, offset = 0x4, fixed_abs, tag = 'smem constant byte address 0x4 - core index']
  #allocation1 [shape = 'u32[144,128]{1,0:T(1,128)}', space=vmem, size = 0x12000, scoped, tag = 'internal scratch']
  #allocation2 [shape = 'f32[8,8]{1,0:T(8,128)}', space=vmem, size = 0x1000, scoped, tag = 'scratch operand']
  #allocation3 [shape = 'f32[8,1]{1,0:T(8,128)}', space=vmem, size = 0x1000, scoped, tag = 'scratch operand']
  %s0 = inlined_call_operand.hbm [shape: f32[8,1024], index: 0, kind: input, shape index: {}]
  %s1 = inlined_call_operand.hbm [shape: f32[8,1024], index: 1, kind: input, shape index: {}]
  %s2 = inlined_call_operand.vmem [shape: f32[1,8], index: 2, kind: input, shape index: {}]
  %s3 = inlined_call_operand.hbm [shape: f32[8,8], index: 3, kind: output, shape index: {}]
  %s4 = sld [smem:[#allocation0]]
  $region61: #{tpu_custom_call.1} parent=0
    _
  %s6 = ssub.s32 1, %s4
  %s7 = scalar_select 0, %s6, %s4
  $region1: #{tpu_custom_call.1} parent=0
    #allocation4 [shape = 'u8[32768]{0}', space=vmem, size = 0x8000, scoped, tag = 'input window, operand 0']
    #allocation5 [shape = 's32[2]{0}', space=sflag, size = 0x8, scoped, tag = 'scoped memory for tpu_custom_call.1']
    #allocation6 [shape = 's32[2]{0}', space=sflag, size = 0x8, scoped, tag = 'scoped memory for tpu_custom_call.1']
    #allocation7 [shape = 'u8[32768]{0}', space=vmem, size = 0x8000, scoped, tag = 'input window, operand 1']
    #allocation8 [shape = 's32[2]{0}', space=sflag, size = 0x8, scoped, tag = 'scoped memory for tpu_custom_call.1']
    #allocation9 [shape = 'u8[4096]{0}', space=vmem, size = 0x1000, scoped, tag = 'output window, operand 0, single buffered']
    %8 = vsyncpa [#allocation5], 0
    %s9 = scalar_lea.sflag [#allocation5], 1
    %10 = vsyncpa %s9, 0
    %11 = vsyncpa [#allocation8], 0
    %s12 = scalar_lea.sflag [#allocation8], 1
    %13 = vsyncpa %s12, 0
    %14 = vsyncpa [#allocation6], 0
    loop: start=0, step=1, limit=4
    $region2: #{tpu_custom_call.1} parent=1 // loop_pre_header
      _
    $region3: #{tpu_custom_call.1} parent=1 // loop_header
      %s16 = sphi 0, %s20
      %p17 = scmp.ge.s32.totalorder %s16, 4
      %s23 = sphi 0, %s35
      %s24 = sphi 0, %s31
      %s25 = sphi 0, %s23
      %s26 = sphi 0, %s24
      %s27 = sphi 0, %s25
      %s28 = sphi 0, %s26
      %s38 = sphi 0, %s40
      %s41 = sphi 0, %s38
      %s42 = sphi 0, %s41
      %s58 = sphi 0, %s42
      %s66 = sphi 0, %s68
      %s69 = sphi 0, %s66
      %s70 = sphi 0, %s69
      %s86 = sphi 0, %s70
      %s90 = sphi 0, %s90
      %s92 = sphi 0, %s90
      %s93 = sphi 0, %s92
      %s107 = sphi 0, %s93
      %s113 = sphi 0, %s115
      %s116 = sphi 0, %s113
      %s117 = sphi 0, %s116
      %s133 = sphi 0, %s117
    $region4: #{tpu_custom_call.1} parent=1 // loop_header_branch
      %19 = sbr.rel (%p17) target = $region8
    $region5: #{tpu_custom_call.1} parent=1 // loop_body
      %s21 = ssub.s32 %s16, 1
      %s22 = ssub.s32 %s16, 2
      %s29 = sadd.s32 1, %s24
      %p30 = scmp.ge.s32.totalorder %s29, 2
      %s31 = scalar_select %p30, 0, %s29
      %s32 = sadd.s32 1, %s23
      %s33 = scalar_select %p30, %s32, %s23
      %p34 = scmp.ge.s32.totalorder %s33, 1
      %s35 = scalar_select %p34, 0, %s33
      %s36 = ssub.s32 %s24, %s31
      %p37 = scmp.eq.s32.totalorder %s36, 0
      %s39 = sadd.s32 %s38, 1
      %s40 = scalar_select %p37, %s38, %s39
      %p43 = pneg %p37
      %p44 = scmp.eq.s32.totalorder %s16, 1
      %p45 = por %p43, %p44
      %p46 = scmp.ne.s32.totalorder %s38, %s41
      %p47 = scmp.eq.s32.totalorder %s16, 0
      %p48 = por %p46, %p47
      %p49 = scmp.ne.s32.totalorder %s38, %s41
      %p50 = scmp.eq.s32.totalorder %s21, 1
      %p51 = por %p49, %p50
      %p52 = scmp.ne.s32.totalorder %s41, %s42
      %p53 = scmp.eq.s32.totalorder %s21, 0
      %p54 = por %p52, %p53
      %p55 = scmp.ne.s32.totalorder %s41, %s42
      %p56 = scmp.eq.s32.totalorder %s22, 1
      %p57 = por %p55, %p56
      %p59 = scmp.ne.s32.totalorder %s42, %s58
      %p60 = scmp.eq.s32.totalorder %s22, 0
      %p61 = por %p59, %p60
      %s62 = ssub.s32 %s23, %s35
      %s63 = ssub.s32 %s24, %s31
      %s64 = sor.u32 %s62, %s63
      %p65 = scmp.eq.s32.totalorder %s64, 0
      %s67 = sadd.s32 %s66, 1
      %s68 = scalar_select %p65, %s66, %s67
      %p71 = pneg %p65
      %p72 = scmp.eq.s32.totalorder %s16, 1
      %p73 = por %p71, %p72
      %p74 = scmp.ne.s32.totalorder %s66, %s69
      %p75 = scmp.eq.s32.totalorder %s16, 0
      %p76 = por %p74, %p75
      %p77 = scmp.ne.s32.totalorder %s66, %s69
      %p78 = scmp.eq.s32.totalorder %s21, 1
      %p79 = por %p77, %p78
      %p80 = scmp.ne.s32.totalorder %s69, %s70
      %p81 = scmp.eq.s32.totalorder %s21, 0
      %p82 = por %p80, %p81
      %p83 = scmp.ne.s32.totalorder %s69, %s70
      %p84 = scmp.eq.s32.totalorder %s22, 1
      %p85 = por %p83, %p84
      %p87 = scmp.ne.s32.totalorder %s70, %s86
      %p88 = scmp.eq.s32.totalorder %s22, 0
      %p89 = por %p87, %p88
      %s91 = sadd.s32 %s90, 1
      %p94 = scmp.eq.s32.totalorder %s16, 1
      %p95 = scmp.ne.s32.totalorder %s90, %s92
      %p96 = scmp.eq.s32.totalorder %s16, 0
      %p97 = por %p95, %p96
      %p98 = scmp.ne.s32.totalorder %s90, %s92
      %p99 = scmp.eq.s32.totalorder %s21, 1
      %p100 = por %p98, %p99
      %p101 = scmp.ne.s32.totalorder %s92, %s93
      %p102 = scmp.eq.s32.totalorder %s21, 0
      %p103 = por %p101, %p102
      %p104 = scmp.ne.s32.totalorder %s92, %s93
      %p105 = scmp.eq.s32.totalorder %s22, 1
      %p106 = por %p104, %p105
      %p108 = scmp.ne.s32.totalorder %s93, %s107
      %p109 = scmp.eq.s32.totalorder %s22, 0
      %p110 = por %p108, %p109
      %s111 = ssub.s32 %s23, %s35
      %p112 = scmp.eq.s32.totalorder %s111, 0
      %s114 = sadd.s32 %s113, 1
      %s115 = scalar_select %p112, %s113, %s114
      %p118 = pneg %p112
      %p119 = scmp.eq.s32.totalorder %s16, 1
      %p120 = por %p118, %p119
      %p121 = scmp.ne.s32.totalorder %s113, %s116
      %p122 = scmp.eq.s32.totalorder %s16, 0
      %p123 = por %p121, %p122
      %p124 = scmp.ne.s32.totalorder %s113, %s116
      %p125 = scmp.eq.s32.totalorder %s21, 1
      %p126 = por %p124, %p125
      %p127 = scmp.ne.s32.totalorder %s116, %s117
      %p128 = scmp.eq.s32.totalorder %s21, 0
      %p129 = por %p127, %p128
      %p130 = scmp.ne.s32.totalorder %s116, %s117
      %p131 = scmp.eq.s32.totalorder %s22, 1
      %p132 = por %p130, %p131
      %p134 = scmp.ne.s32.totalorder %s117, %s133
      %p135 = scmp.eq.s32.totalorder %s22, 0
      %p136 = por %p134, %p135
      %p137 = scmp.le.s32.totalorder 1, %s16
      %p138 = scmp.lt.s32.totalorder %s16, 3
      %p139 = pnand %p137, %p138
      %p140 = pneg %p139
      // Predicated region
      $region9: #{tpu_custom_call.1} parent=5 // pred_check
        _
      $region10: #{tpu_custom_call.1} parent=5 // pred_check_branch
        %142 = sbr.rel (%p139) target = $region12
      $region11: #{tpu_custom_call.1} parent=5 // pred_region
        %s143 = ssub.s32 %s16, 1
        // Predicated region
        $region13: #{tpu_custom_call.1} parent=11 // pred_check
          %p144 = pneg %p103
        $region14: #{tpu_custom_call.1} parent=11 // pred_check_branch
          %146 = sbr.rel (%p144) target = $region16
        $region15: #{tpu_custom_call.1} parent=11 // pred_region
          _
        $region16: #{tpu_custom_call.1} parent=11 // pred_fallthru
          _
      $region12: #{tpu_custom_call.1} parent=5 // pred_fallthru
        _
      %p147 = scmp.lt.s32.totalorder %s16, 2
      // Predicated region
      $region17: #{tpu_custom_call.1} parent=5 // pred_check
        %p148 = pneg %p147
      $region18: #{tpu_custom_call.1} parent=5 // pred_check_branch
        %150 = sbr.rel (%p148) target = $region20
      $region19: #{tpu_custom_call.1} parent=5 // pred_region
        // Predicated region
        $region21: #{tpu_custom_call.1} parent=19 // pred_check
          %p151 = pneg %p48
        $region22: #{tpu_custom_call.1} parent=19 // pred_check_branch
          %153 = sbr.rel (%p151) target = $region24
        $region23: #{tpu_custom_call.1} parent=19 // pred_region
          %s154 = sand.u32 %s38, 1
          %s155 = scalar_lea.sflag [#allocation5], %s154
          %s156 = sand.u32 %s38, 1
          %s157 = smul.addr %s156, 32
          %s158 = scalar_lea.vmem [#allocation4], %s157
          %s159 = smul.u32 4, %s24
          %s161 = ssub.s32 512, 512
          %162 = vsyncadd %s155, %s161
          %s163 = smul.addr %s159, 128
          %s164 = scalar_lea.hbm %s0, %s163
          %s166 = sshll.u32 %s158, 4
          %s167 = int_to_ptr.vmem [resolvable:$true] %s166
          %169 = dma.hbm_to_vmem [thread:$0]  %s164, 512, %s167, %s155
        $region24: #{tpu_custom_call.1} parent=19 // pred_fallthru
          _
        // Predicated region
        $region25: #{tpu_custom_call.1} parent=19 // pred_check
          %p170 = pneg %p76
        $region26: #{tpu_custom_call.1} parent=19 // pred_check_branch
          %172 = sbr.rel (%p170) target = $region28
        $region27: #{tpu_custom_call.1} parent=19 // pred_region
          %s173 = sand.u32 %s66, 1
          %s174 = scalar_lea.sflag [#allocation8], %s173
          %s175 = sand.u32 %s66, 1
          %s176 = smul.addr %s175, 32
          %s177 = scalar_lea.vmem [#allocation7], %s176
          %s178 = smul.u32 4, %s24
          %s180 = ssub.s32 512, 512
          %181 = vsyncadd %s174, %s180
          %s182 = smul.addr %s23, 8
          %s183 = sadd.s32 %s178, %s182
          %s184 = smul.addr %s183, 128
          %s185 = scalar_lea.hbm %s1, %s184
          %s187 = sshll.u32 %s177, 4
          %s188 = int_to_ptr.vmem [resolvable:$true] %s187
          %190 = dma.hbm_to_vmem [thread:$0]  %s185, 512, %s188, %s174
        $region28: #{tpu_custom_call.1} parent=19 // pred_fallthru
          _
      $region20: #{tpu_custom_call.1} parent=5 // pred_fallthru
        _
      %p191 = scmp.le.s32.totalorder 1, %s16
      %p192 = scmp.lt.s32.totalorder %s16, 3
      %p193 = pnand %p191, %p192
      %p194 = pneg %p193
      // Predicated region
      $region29: #{tpu_custom_call.1} parent=5 // pred_check
        _
      $region30: #{tpu_custom_call.1} parent=5 // pred_check_branch
        %196 = sbr.rel (%p193) target = $region32
      $region31: #{tpu_custom_call.1} parent=5 // pred_region
        %s197 = ssub.s32 %s16, 1
        %s198 = sand.u32 %s41, 1
        %s199 = scalar_lea.sflag [#allocation5], %s198
        %s200 = sand.u32 %s41, 1
        %s201 = smul.addr %s200, 32
        %s202 = scalar_lea.vmem [#allocation4], %s201
        // Predicated region
        $region33: #{tpu_custom_call.1} parent=31 // pred_check
          %p203 = pneg %p54
        $region34: #{tpu_custom_call.1} parent=31 // pred_check_branch
          %205 = sbr.rel (%p203) target = $region36
        $region35: #{tpu_custom_call.1} parent=31 // pred_region
          %206 = dma.done %s199, 512
        $region36: #{tpu_custom_call.1} parent=31 // pred_fallthru
          _
        %s207 = sand.u32 %s69, 1
        %s208 = scalar_lea.sflag [#allocation8], %s207
        %s209 = sand.u32 %s69, 1
        %s210 = smul.addr %s209, 32
        %s211 = scalar_lea.vmem [#allocation7], %s210
        // Predicated region
        $region37: #{tpu_custom_call.1} parent=31 // pred_check
          %p212 = pneg %p82
        $region38: #{tpu_custom_call.1} parent=31 // pred_check_branch
          %214 = sbr.rel (%p212) target = $region40
        $region39: #{tpu_custom_call.1} parent=31 // pred_region
          %215 = dma.done %s208, 512
        $region40: #{tpu_custom_call.1} parent=31 // pred_fallthru
          _
        %s216 = sand.u32 %s41, 1
        %s217 = scalar_lea.sflag [#allocation5], %s216
        %s218 = sand.u32 %s41, 1
        %s219 = smul.addr %s218, 32
        %s220 = scalar_lea.vmem [#allocation4], %s219
        %p221 = pneg %p54
        %p222 = pneg %p51
        %s223 = sand.u32 %s69, 1
        %s224 = scalar_lea.sflag [#allocation8], %s223
        %s225 = sand.u32 %s69, 1
        %s226 = smul.addr %s225, 32
        %s227 = scalar_lea.vmem [#allocation7], %s226
        %p228 = pneg %p82
        %p229 = pneg %p79
        %p230 = pneg %p103
        %p231 = pneg %p100
        %p232 = pneg %p129
        %p233 = pneg %p126
        %s234 = smul.u32 4, %s26
        %s235 = smul.u32 4, %s26
        %p236 = scmp.eq.s32.totalorder %s26, 0
        // Predicated region
        $region41: #{tpu_custom_call.1} parent=31 // pred_check
          %p237 = pneg %p236
        $region42: #{tpu_custom_call.1} parent=31 // pred_check_branch
          %239 = sbr.rel (%p237) target = $region44
        $region43: #{tpu_custom_call.1} parent=31 // pred_region
          %vm240 = vcmask 64512
          %241 = vst.msk [vmem:[#allocation2] sm:$0xff] %vm240, 0.0
          %vm242 = vcmask 7168
          %243 = vst.msk [vmem:[#allocation3] sm:$0xff] %vm242, 0.0
        $region44: #{tpu_custom_call.1} parent=31 // pred_fallthru
          _
        %v244 = vld [vmem:[%s202] sm:$0xff]
        %v245 = vld [vmem:[%s202 + $0x8] sm:$0xff]
        %v246 = vld [vmem:[%s202 + $0x10] sm:$0xff]
        %v247 = vld [vmem:[%s202 + $0x18] sm:$0xff]
        %v248 = vld [vmem:[%s211] sm:$0xff]
        %v249 = vld [vmem:[%s211 + $0x8] sm:$0xff]
        %v250 = vld [vmem:[%s211 + $0x10] sm:$0xff]
        %v251 = vld [vmem:[%s211 + $0x18] sm:$0xff]
        %v252 = vld [vmem:[#allocation2] sm:$0xff]
        %253 = vmatprep.subr.mxu0 0.0
        %254 = vmatpush1.xpose.msra.mxu0 0.0
        %255 = vmatprep.subr.mxu0 0.0
        %256 = vmatpush1.xpose.msra.mxu0 0.0
        %257 = vmatprep.subr.mxu0 0.0
        %258 = vmatpush1.xpose.msra.mxu0 0.0
        %259 = vmatprep.subr.mxu0 0.0
        %260 = vmatpush1.xpose.msra.mxu0 0.0
        %261 = vmatprep.subr.mxu0 0.0
        %262 = vmatpush1.xpose.msra.mxu0 0.0
        %263 = vmatprep.subr.mxu0 0.0
        %264 = vmatpush1.xpose.msra.mxu0 0.0
        %265 = vmatprep.subr.mxu0 0.0
        %266 = vmatpush1.xpose.msra.mxu0 0.0
        %267 = vmatprep.subr.mxu0 0.0
        %268 = vmatpush1.xpose.msra.mxu0 0.0
        %269 = vmatprep.subr.mxu0 0.0
        %270 = vmatpush1.xpose.msra.mxu0 0.0
        %271 = vmatprep.subr.mxu0 0.0
        %272 = vmatpush1.xpose.msra.mxu0 0.0
        %273 = vmatprep.subr.mxu0 0.0
        %274 = vmatpush1.xpose.msra.mxu0 0.0
        %275 = vmatprep.subr.mxu0 0.0
        %276 = vmatpush1.xpose.msra.mxu0 0.0
        %277 = vmatprep.subr.mxu0 0.0
        %278 = vmatpush1.xpose.msra.mxu0 0.0
        %279 = vmatprep.subr.mxu0 0.0
        %280 = vmatpush1.xpose.msra.mxu0 0.0
        %281 = vmatprep.subr.mxu0 0.0
        %282 = vmatpush1.xpose.msra.mxu0 0.0
        %283 = vmatprep.subr.mxu0 %v245
        %284 = vmatpush1.xpose.msra.mxu0 %v244
        %285 = vmatprep.subr.mxu0 0.0
        %286 = vmatpush2.xpose.msra.mxu0 0.0
        %287 = vmatprep.subr.mxu0 0.0
        %288 = vmatpush2.xpose.msra.mxu0 0.0
        %289 = vmatprep.subr.mxu0 0.0
        %290 = vmatpush2.xpose.msra.mxu0 0.0
        %291 = vmatprep.subr.mxu0 0.0
        %292 = vmatpush2.xpose.msra.mxu0 0.0
        %293 = vmatprep.subr.mxu0 0.0
        %294 = vmatpush2.xpose.msra.mxu0 0.0
        %295 = vmatprep.subr.mxu0 0.0
        %296 = vmatpush2.xpose.msra.mxu0 0.0
        %297 = vmatprep.subr.mxu0 0.0
        %298 = vmatpush2.xpose.msra.mxu0 0.0
        %299 = vmatprep.subr.mxu0 0.0
        %300 = vmatpush2.xpose.msra.mxu0 0.0
        %301 = vmatprep.subr.mxu0 0.0
        %302 = vmatpush2.xpose.msra.mxu0 0.0
        %303 = vmatprep.subr.mxu0 0.0
        %304 = vmatpush2.xpose.msra.mxu0 0.0
        %305 = vmatprep.subr.mxu0 0.0
        %306 = vmatpush2.xpose.msra.mxu0 0.0
        %307 = vmatprep.subr.mxu0 0.0
        %308 = vmatpush2.xpose.msra.mxu0 0.0
        %309 = vmatprep.subr.mxu0 0.0
        %310 = vmatpush2.xpose.msra.mxu0 0.0
        %311 = vmatprep.subr.mxu0 0.0
        %312 = vmatpush2.xpose.msra.mxu0 0.0
        %313 = vmatprep.subr.mxu0 0.0
        %314 = vmatpush2.xpose.msra.mxu0 0.0
        %315 = vmatprep.subr.mxu0 0.0
        %316 = vmatpush2.xpose.msra.mxu0 0.0
        %317 = vmatprep.mubr.f32.mxu0 %v249
        %318 = vmatmul.mubr.f32.gmra.mxu0 %v248
        %v319 = vpop.f32.mrf.mxu0
        %v320 = vadd.f32 0.0, %v319
        %v321 = vpop.f32.mrf.mxu0
        %322 = vdwg.mxu0
        %323 = vmatprep.subr.mxu0 0.0
        %324 = vmatpush1.xpose.msra.mxu0 0.0
        %325 = vmatprep.subr.mxu0 0.0
        %326 = vmatpush1.xpose.msra.mxu0 0.0
        %327 = vmatprep.subr.mxu0 0.0
        %328 = vmatpush1.xpose.msra.mxu0 0.0
        %329 = vmatprep.subr.mxu0 0.0
        %330 = vmatpush1.xpose.msra.mxu0 0.0
        %331 = vmatprep.subr.mxu0 0.0
        %332 = vmatpush1.xpose.msra.mxu0 0.0
        %333 = vmatprep.subr.mxu0 0.0
        %334 = vmatpush1.xpose.msra.mxu0 0.0
        %335 = vmatprep.subr.mxu0 0.0
        %336 = vmatpush1.xpose.msra.mxu0 0.0
        %337 = vmatprep.subr.mxu0 0.0
        %338 = vmatpush1.xpose.msra.mxu0 0.0
        %339 = vmatprep.subr.mxu0 0.0
        %340 = vmatpush1.xpose.msra.mxu0 0.0
        %341 = vmatprep.subr.mxu0 0.0
        %342 = vmatpush1.xpose.msra.mxu0 0.0
        %343 = vmatprep.subr.mxu0 0.0
        %344 = vmatpush1.xpose.msra.mxu0 0.0
        %345 = vmatprep.subr.mxu0 0.0
        %346 = vmatpush1.xpose.msra.mxu0 0.0
        %347 = vmatprep.subr.mxu0 0.0
        %348 = vmatpush1.xpose.msra.mxu0 0.0
        %349 = vmatprep.subr.mxu0 0.0
        %350 = vmatpush1.xpose.msra.mxu0 0.0
        %351 = vmatprep.subr.mxu0 0.0
        %352 = vmatpush1.xpose.msra.mxu0 0.0
        %353 = vmatprep.subr.mxu0 %v247
        %354 = vmatpush1.xpose.msra.mxu0 %v246
        %355 = vmatprep.subr.mxu0 0.0
        %356 = vmatpush2.xpose.msra.mxu0 0.0
        %357 = vmatprep.subr.mxu0 0.0
        %358 = vmatpush2.xpose.msra.mxu0 0.0
        %359 = vmatprep.subr.mxu0 0.0
        %360 = vmatpush2.xpose.msra.mxu0 0.0
        %361 = vmatprep.subr.mxu0 0.0
        %362 = vmatpush2.xpose.msra.mxu0 0.0
        %363 = vmatprep.subr.mxu0 0.0
        %364 = vmatpush2.xpose.msra.mxu0 0.0
        %365 = vmatprep.subr.mxu0 0.0
        %366 = vmatpush2.xpose.msra.mxu0 0.0
        %367 = vmatprep.subr.mxu0 0.0
        %368 = vmatpush2.xpose.msra.mxu0 0.0
        %369 = vmatprep.subr.mxu0 0.0
        %370 = vmatpush2.xpose.msra.mxu0 0.0
        %371 = vmatprep.subr.mxu0 0.0
        %372 = vmatpush2.xpose.msra.mxu0 0.0
        %373 = vmatprep.subr.mxu0 0.0
        %374 = vmatpush2.xpose.msra.mxu0 0.0
        %375 = vmatprep.subr.mxu0 0.0
        %376 = vmatpush2.xpose.msra.mxu0 0.0
        %377 = vmatprep.subr.mxu0 0.0
        %378 = vmatpush2.xpose.msra.mxu0 0.0
        %379 = vmatprep.subr.mxu0 0.0
        %380 = vmatpush2.xpose.msra.mxu0 0.0
        %381 = vmatprep.subr.mxu0 0.0
        %382 = vmatpush2.xpose.msra.mxu0 0.0
        %383 = vmatprep.subr.mxu0 0.0
        %384 = vmatpush2.xpose.msra.mxu0 0.0
        %385 = vmatprep.subr.mxu0 0.0
        %386 = vmatpush2.xpose.msra.mxu0 0.0
        %387 = vmatprep.mubr.f32.mxu0 %v251
        %388 = vmatmul.mubr.f32.gmra.mxu0 %v250
        %v389 = vpop.f32.mrf.mxu0
        %v390 = vadd.f32 %v320, %v389
        %v391 = vpop.f32.mrf.mxu0
        %392 = vdwg.mxu0
        %v393 = vadd.f32 %v252, %v390
        %vm394 = vcmask 64512
        %395 = vst.msk [vmem:[#allocation2] sm:$0xff] %vm394, %v393
        %v396 = vld [vmem:[#allocation3] sm:$0xff]
        %v397 = vmul.f32 %v248, %v248
        %v398 = vmul.f32 %v249, %v249
        %v399 = vmul.f32 %v250, %v250
        %v400 = vmul.f32 %v251, %v251
        %v401 = vadd.f32 %v397, %v398
        %v402 = vadd.f32 %v401, %v399
        %v403 = vadd.f32 %v402, %v400
        %404 = vadd.xlane.f32.xlu0 %v403
        %v405 = vpop.xlane.xlu0 %404
        %v406 = vadd.f32 %v396, %v405
        %vm407 = vcmask 7168
        %408 = vst.msk [vmem:[#allocation3] sm:$0xff] %vm407, %v406
        %p409 = scmp.eq.s32.totalorder %s26, 1
        // Predicated region
        $region45: #{tpu_custom_call.1} parent=31 // pred_check
          %p410 = pneg %p409
        $region46: #{tpu_custom_call.1} parent=31 // pred_check_branch
          %412 = sbr.rel (%p410) target = $region48
        $region47: #{tpu_custom_call.1} parent=31 // pred_region
          %v413 = vld [vmem:[#allocation2] sm:$0xff]
          %v414 = vmul.f32 %v413, 2.0
          %v415 = vld [vmem:[#allocation3] sm:$0xff]
          %417 = vset.pattern.permute.xlu0 0
          %418 = vperm.xlu0 %417, %v415
          %v419 = vpop.permute.xlu0 %418
          %v421 = vsub.f32 %v414, %v419
          %v422 = vld [vmem:[%s2] sm:$0x1]
          %v424 = vlaneseq
          %v425 = vshrl.u32 %v424, 7
          %v426 = vsub.s32 0, %v425
          %v427 = vrot.slane %v422, %v426
          %v429 = vsub.f32 %v421, %v427
          %430 = vst.msk [vmem:[#allocation9] sm:$0xff] %vm394, %v429
        $region48: #{tpu_custom_call.1} parent=31 // pred_fallthru
          _
        // Predicated region
        $region49: #{tpu_custom_call.1} parent=31 // pred_check
          %p431 = pneg %p126
        $region50: #{tpu_custom_call.1} parent=31 // pred_check_branch
          %433 = sbr.rel (%p431) target = $region52
        $region51: #{tpu_custom_call.1} parent=31 // pred_region
          %s435 = ssub.s32 128, 128
          %436 = vsyncadd [#allocation6], %s435
          %s437 = smul.addr %s25, 128
          %s438 = scalar_lea.hbm %s3, %s437
          %s440 = sshll.u32 [#allocation9], 4
          %s441 = int_to_ptr.vmem [resolvable:$true] %s440
          %443 = dma.vmem_to_hbm [thread:$0]  %s441, 128, %s438, [#allocation6]
        $region52: #{tpu_custom_call.1} parent=31 // pred_fallthru
          _
        // Predicated region
        $region53: #{tpu_custom_call.1} parent=31 // pred_check
          %p444 = pneg %p126
        $region54: #{tpu_custom_call.1} parent=31 // pred_check_branch
          %446 = sbr.rel (%p444) target = $region56
        $region55: #{tpu_custom_call.1} parent=31 // pred_region
          %447 = dma.done [#allocation6], 128
        $region56: #{tpu_custom_call.1} parent=31 // pred_fallthru
          _
      $region32: #{tpu_custom_call.1} parent=5 // pred_fallthru
        _
      %p448 = scmp.le.s32.totalorder 2, %s16
      // Predicated region
      $region57: #{tpu_custom_call.1} parent=5 // pred_check
        %p449 = pneg %p448
      $region58: #{tpu_custom_call.1} parent=5 // pred_check_branch
        %451 = sbr.rel (%p449) target = $region60
      $region59: #{tpu_custom_call.1} parent=5 // pred_region
        %s452 = ssub.s32 %s16, 2
      $region60: #{tpu_custom_call.1} parent=5 // pred_fallthru
        _
    $region6: #{tpu_custom_call.1} parent=1 // loop_footer
      %s20 = sadd.s32 1, %s16
    $region7: #{tpu_custom_call.1} parent=1 // loop_footer_branch
      %15 = sbr.rel target = $region3
    $region8: #{tpu_custom_call.1} parent=1 // loop_exit
      _
    %453 = vsyncpa [#allocation5], 1
    %s454 = scalar_lea.sflag [#allocation5], 1
    %455 = vsyncpa %s454, 1
    %456 = vsyncpa [#allocation8], 1
    %s457 = scalar_lea.sflag [#allocation8], 1
    %458 = vsyncpa %s457, 1
    %459 = vsyncpa [#allocation6], 1
    %s460 = scalar_lea.sflag [#allocation6], 1
    %461 = vsyncpa %s460, 1

</llo_original>
